<compile_context>
chip_gen: v7x
topology: tpu7x:2x2x1
jax: 0.10.0
libtpu: 0.0.40
codegen_flags: <defaults>
</compile_context>

<pallas_src>
import functools

import jax
import jax.numpy as jnp
from jax import lax
from jax.experimental import pallas as pl
from jax.experimental.pallas import tpu as pltpu

IN_FEATURES = 16
OUT_FEATURES = 8
OTHER = 1.0  # self.other = 1


def linear_relu_kernel(w_ref, b_ref, x_ref, ot_ref):
    # w_ref : (OUT, IN)   torch-layout weight, used directly as MXU LHS
    # b_ref : (OUT, 1)    bias with +OTHER already folded in
    # x_ref : (TB, IN)    batch-row tile, read straight from HBM (no host .T)
    # ot_ref: (OUT, TB)   lane-dense output tile (unmasked full-width stores)
    y = lax.dot_general(
        w_ref[...], x_ref[...],
        dimension_numbers=(((1,), (1,)), ((), ())),   # contract IN with IN
        preferred_element_type=jnp.float32,
    )                                                 # -> (OUT, TB)
    ot_ref[...] = jnp.maximum(y + b_ref[...], 0.0).astype(ot_ref.dtype)


def _round_up(n, m):
    return ((n + m - 1) // m) * m


@functools.partial(jax.jit, static_argnames=("tb",))
def linear_plus_relu(x, weight, bias, *, tb=32768):
    """x: (B, 16) f32, weight: (8, 16) f32 (torch layout), bias: (8,) f32."""
    B = x.shape[0]
    # Batch tile: multiple of 128 lanes, large enough to amortize per-step
    # pipeline overhead, but never over-padding tiny batches.
    TB = min(tb, _round_up(B, 128))
    B_pad = _round_up(B, TB)
    if B_pad != B:
        # Pad only the (B, 16) rows (no transposed/padded copy of the input).
        x = jnp.pad(x, ((0, B_pad - B), (0, 0)))

    b2 = (bias.astype(jnp.float32) + jnp.float32(OTHER)).reshape(
        OUT_FEATURES, 1)                               # fold +other once

    grid = (B_pad // TB,)
    out_t = pl.pallas_call(
        linear_relu_kernel,
        out_shape=jax.ShapeDtypeStruct((OUT_FEATURES, B_pad), x.dtype),
        grid_spec=pltpu.PrefetchScalarGridSpec(
            num_scalar_prefetch=0,
            grid=grid,
            in_specs=[
                pl.BlockSpec((OUT_FEATURES, IN_FEATURES), lambda i: (0, 0)),
                pl.BlockSpec((OUT_FEATURES, 1), lambda i: (0, 0)),
                pl.BlockSpec((TB, IN_FEATURES), lambda i: (i, 0)),
            ],
            out_specs=pl.BlockSpec((OUT_FEATURES, TB), lambda i: (0, i)),
        ),
        compiler_params=pltpu.CompilerParams(
            dimension_semantics=("parallel",),  # megacore-shardable on v7x
        ),
    )(weight, b2, x)

    # Back to torch layout (B, OUT). Transposing the tiny (8, B) result is
    # bounded at +32 B/row; far cheaper than narrow (TB, 8) masked stores.
    return out_t[:, :B].T


if __name__ == "__main__":
    key = jax.random.PRNGKey(0)
    kx, kw, kb = jax.random.split(key, 3)

    # Deterministic PyTorch-style Linear init: U(-1/sqrt(in), 1/sqrt(in))
    bound = 1.0 / (IN_FEATURES ** 0.5)
    weight = jax.random.uniform(
        kw, (OUT_FEATURES, IN_FEATURES), minval=-bound, maxval=bound,
        dtype=jnp.float32)
    bias = jax.random.uniform(
        kb, (OUT_FEATURES,), minval=-bound, maxval=bound, dtype=jnp.float32)

    # Small-shape check (B=8, in=16) consistent with the module.
    B = 8
    x = jax.random.normal(kx, (B, IN_FEATURES), dtype=jnp.float32)
    out = jax.block_until_ready(linear_plus_relu(x, weight, bias))
    ref = jnp.maximum(x @ weight.T + bias + OTHER, 0.0)
    assert out.shape == (B, OUT_FEATURES)
    assert jnp.allclose(out, ref, atol=1e-5, rtol=1e-5)

    # Multi-tile grid with a ragged tail (exercises padding + grid pipelining).
    B2 = 300
    x2 = jax.random.normal(jax.random.PRNGKey(1), (B2, IN_FEATURES),
                           dtype=jnp.float32)
    out2 = jax.block_until_ready(linear_plus_relu(x2, weight, bias, tb=128))
    ref2 = jnp.maximum(x2 @ weight.T + bias + OTHER, 0.0)
    assert out2.shape == (B2, OUT_FEATURES)
    assert jnp.allclose(out2, ref2, atol=1e-5, rtol=1e-5)

    print("KERNEL_OK")
</pallas_src>

<mosaic_0001>
module attributes {stable_mosaic.version = 11 : i64} {
  func.func @linear_relu_kernel(%arg0: i32, %arg1: memref<8x16xf32, #tpu.memory_space<vmem>>, %arg2: memref<8x1xf32, #tpu.memory_space<vmem>>, %arg3: memref<128x16xf32, #tpu.memory_space<vmem>>, %arg4: memref<8x128xf32, #tpu.memory_space<vmem>>) attributes {dimension_semantics = [#tpu.dimension_semantics<parallel>], iteration_bounds = array<i64: 1>, scalar_prefetch = 0 : i64, scratch_operands = 0 : i64, tpu.core_type = #tpu.core_type<tc>, window_params = [{pipeline_mode = #tpu.pipeline_mode<synchronous>, transform_indices = @transform_0, window_bounds = array<i64: 8, 16>}, {pipeline_mode = #tpu.pipeline_mode<synchronous>, transform_indices = @transform_1, window_bounds = array<i64: 8, 1>}, {transform_indices = @transform_2, window_bounds = array<i64: 128, 16>}, {transform_indices = @transform_3, window_bounds = array<i64: 8, 128>}]} {
    %c0 = arith.constant 0 : index
    %c0_0 = arith.constant 0 : index
    %0 = vector.load %arg1[%c0, %c0_0] : memref<8x16xf32, #tpu.memory_space<vmem>>, vector<8x16xf32>
    %c0_1 = arith.constant 0 : index
    %c0_2 = arith.constant 0 : index
    %1 = vector.load %arg3[%c0_1, %c0_2] : memref<128x16xf32, #tpu.memory_space<vmem>>, vector<128x16xf32>
    %cst = arith.constant dense<0.000000e+00> : vector<8x128xf32>
    %2 = tpu.matmul %0, %1, %cst {dimension_numbers = #tpu.dot_dimension_numbers<[1], [1], [0], [0], [0, 0, 1, 0], [], []>} : vector<8x16xf32>, vector<128x16xf32>, vector<8x128xf32> -> vector<8x128xf32>
    %c0_3 = arith.constant 0 : index
    %c0_4 = arith.constant 0 : index
    %3 = vector.load %arg2[%c0_3, %c0_4] : memref<8x1xf32, #tpu.memory_space<vmem>>, vector<8x1xf32>
    %4 = vector.broadcast %3 : vector<8x1xf32> to vector<8x128xf32>
    %5 = arith.addf %2, %4 : vector<8x128xf32>
    %cst_5 = arith.constant 0.000000e+00 : f32
    %6 = vector.broadcast %cst_5 : f32 to vector<8x128xf32>
    %7 = arith.maximumf %5, %6 : vector<8x128xf32>
    %c0_6 = arith.constant 0 : index
    %c0_7 = arith.constant 0 : index
    %8 = vector.load %arg4[%c0_6, %c0_7] : memref<8x128xf32, #tpu.memory_space<vmem>>, vector<8x128xf32>
    tpu.vector_store %arg4[%c0_6, %c0_7], %7 {strides = array<i32>} : memref<8x128xf32, #tpu.memory_space<vmem>>, vector<8x128xf32>,
    return
  }
  func.func @transform_0(%arg0: i32) -> (i32, i32) {
    %c0_i32 = arith.constant 0 : i32
    %c0_i32_0 = arith.constant 0 : i32
    %c0_i32_1 = arith.constant 0 : i32
    return %c0_i32, %c0_i32_0 : i32, i32
  }
  func.func @transform_1(%arg0: i32) -> (i32, i32) {
    %c0_i32 = arith.constant 0 : i32
    %c0_i32_0 = arith.constant 0 : i32
    %c0_i32_1 = arith.constant 0 : i32
    return %c0_i32, %c0_i32_0 : i32, i32
  }
  func.func @transform_2(%arg0: i32) -> (i32, i32) {
    %c0_i32 = arith.constant 0 : i32
    %c0_i32_0 = arith.constant 0 : i32
    return %arg0, %c0_i32 : i32, i32
  }
  func.func @transform_3(%arg0: i32) -> (i32, i32) {
    %c0_i32 = arith.constant 0 : i32
    %c0_i32_0 = arith.constant 0 : i32
    return %c0_i32, %arg0 : i32, i32
  }
}

</mosaic_0001>

<llo_original>
// kernel: linear_plus_relu.1
$region0: #{linear_plus_relu.1}
  #allocation0 [shape = 'u32[]', space=smem, size = 0x4, offset = 0x4, fixed_abs, tag = 'smem constant byte address 0x4 - core index']
  #allocation1 [shape = 'u32[144,128]{1,0:T(1,128)}', space=vmem, size = 0x12000, scoped, tag = 'internal scratch']
  %s0 = inlined_call_operand.vmem [shape: f32[8,16], index: 0, kind: input, shape index: {}]
  %s1 = inlined_call_operand.vmem [shape: f32[8,1], index: 1, kind: input, shape index: {}]
  %s2 = inlined_call_operand.vmem [shape: f32[128,16], index: 2, kind: input, shape index: {}]
  %s3 = inlined_call_operand.vmem [shape: f32[8,128], index: 3, kind: output, shape index: {}]
  %s4 = sld [smem:[#allocation0]]
  $region22: #{linear_plus_relu.1} parent=0
    _
  %s6 = ssub.s32 1, %s4
  %s7 = scalar_select 0, %s6, %s4
  // Predicated region
  $region2: #{linear_plus_relu.1} parent=0 // pred_check
    _
  $region3: #{linear_plus_relu.1} parent=0 // pred_check_branch
    %9 = sbr.rel (0) target = $region5
  $region4: #{linear_plus_relu.1} parent=0 // pred_region
    _
  $region5: #{linear_plus_relu.1} parent=0 // pred_fallthru
    _
  // Predicated region
  $region6: #{linear_plus_relu.1} parent=0 // pred_check
    _
  $region7: #{linear_plus_relu.1} parent=0 // pred_check_branch
    %11 = sbr.rel (0) target = $region9
  $region8: #{linear_plus_relu.1} parent=0 // pred_region
    _
  $region9: #{linear_plus_relu.1} parent=0 // pred_fallthru
    _
  // Predicated region
  $region10: #{linear_plus_relu.1} parent=0 // pred_check
    _
  $region11: #{linear_plus_relu.1} parent=0 // pred_check_branch
    %13 = sbr.rel (0) target = $region13
  $region12: #{linear_plus_relu.1} parent=0 // pred_region
    _
  $region13: #{linear_plus_relu.1} parent=0 // pred_fallthru
    _
  %v14 = vld [vmem:[%s0] sm:$0xff]
  %v15 = vld [vmem:[%s2] sm:$0xff]
  %v16 = vld [vmem:[%s2 + $0x8] sm:$0xff]
  %v17 = vld [vmem:[%s2 + $0x10] sm:$0xff]
  %v18 = vld [vmem:[%s2 + $0x18] sm:$0xff]
  %v19 = vld [vmem:[%s2 + $0x20] sm:$0xff]
  %v20 = vld [vmem:[%s2 + $0x28] sm:$0xff]
  %v21 = vld [vmem:[%s2 + $0x30] sm:$0xff]
  %v22 = vld [vmem:[%s2 + $0x38] sm:$0xff]
  %v23 = vld [vmem:[%s2 + $0x40] sm:$0xff]
  %v24 = vld [vmem:[%s2 + $0x48] sm:$0xff]
  %v25 = vld [vmem:[%s2 + $0x50] sm:$0xff]
  %v26 = vld [vmem:[%s2 + $0x58] sm:$0xff]
  %v27 = vld [vmem:[%s2 + $0x60] sm:$0xff]
  %v28 = vld [vmem:[%s2 + $0x68] sm:$0xff]
  %v29 = vld [vmem:[%s2 + $0x70] sm:$0xff]
  %v30 = vld [vmem:[%s2 + $0x78] sm:$0xff]
  %v31 = vld [vmem:[%s1] sm:$0xff]
  %33 = vset.pattern.permute.xlu0 0
  %34 = vperm.xlu0 %33, %v31
  %v35 = vpop.permute.xlu0 %34
  %vm37 = vcmask 130048
  %v39 = vsel %vm37, %v14, 0
  %v42 = vsel %vm37, %v15, 0
  %v45 = vsel %vm37, %v16, 0
  %v48 = vsel %vm37, %v17, 0
  %v51 = vsel %vm37, %v18, 0
  %v54 = vsel %vm37, %v19, 0
  %v57 = vsel %vm37, %v20, 0
  %v60 = vsel %vm37, %v21, 0
  %v63 = vsel %vm37, %v22, 0
  %v66 = vsel %vm37, %v23, 0
  %v69 = vsel %vm37, %v24, 0
  %v72 = vsel %vm37, %v25, 0
  %v75 = vsel %vm37, %v26, 0
  %v78 = vsel %vm37, %v27, 0
  %v81 = vsel %vm37, %v28, 0
  %v84 = vsel %vm37, %v29, 0
  %v87 = vsel %vm37, %v30, 0
  %89 = vmatprep.subr.mxu0 0.0
  %90 = vmatpush1.xpose.msra.mxu0 %v42
  %91 = vmatprep.subr.mxu0 0.0
  %92 = vmatpush1.xpose.msra.mxu0 %v45
  %93 = vmatprep.subr.mxu0 0.0
  %94 = vmatpush1.xpose.msra.mxu0 %v48
  %95 = vmatprep.subr.mxu0 0.0
  %96 = vmatpush1.xpose.msra.mxu0 %v51
  %97 = vmatprep.subr.mxu0 0.0
  %98 = vmatpush1.xpose.msra.mxu0 %v54
  %99 = vmatprep.subr.mxu0 0.0
  %100 = vmatpush1.xpose.msra.mxu0 %v57
  %101 = vmatprep.subr.mxu0 0.0
  %102 = vmatpush1.xpose.msra.mxu0 %v60
  %103 = vmatprep.subr.mxu0 0.0
  %104 = vmatpush1.xpose.msra.mxu0 %v63
  %105 = vmatprep.subr.mxu0 0.0
  %106 = vmatpush1.xpose.msra.mxu0 %v66
  %107 = vmatprep.subr.mxu0 0.0
  %108 = vmatpush1.xpose.msra.mxu0 %v69
  %109 = vmatprep.subr.mxu0 0.0
  %110 = vmatpush1.xpose.msra.mxu0 %v72
  %111 = vmatprep.subr.mxu0 0.0
  %112 = vmatpush1.xpose.msra.mxu0 %v75
  %113 = vmatprep.subr.mxu0 0.0
  %114 = vmatpush1.xpose.msra.mxu0 %v78
  %115 = vmatprep.subr.mxu0 0.0
  %116 = vmatpush1.xpose.msra.mxu0 %v81
  %117 = vmatprep.subr.mxu0 0.0
  %118 = vmatpush1.xpose.msra.mxu0 %v84
  %119 = vmatprep.subr.mxu0 0.0
  %120 = vmatpush1.xpose.msra.mxu0 %v87
  %121 = vmatprep.subr.mxu0 0.0
  %122 = vmatpush1.xpose.msra.mxu0 0.0
  %123 = vmatprep.subr.mxu0 0.0
  %124 = vmatpush1.xpose.msra.mxu0 0.0
  %125 = vmatprep.subr.mxu0 0.0
  %126 = vmatpush1.xpose.msra.mxu0 0.0
  %127 = vmatprep.subr.mxu0 0.0
  %128 = vmatpush1.xpose.msra.mxu0 0.0
  %129 = vmatprep.subr.mxu0 0.0
  %130 = vmatpush1.xpose.msra.mxu0 0.0
  %131 = vmatprep.subr.mxu0 0.0
  %132 = vmatpush1.xpose.msra.mxu0 0.0
  %133 = vmatprep.subr.mxu0 0.0
  %134 = vmatpush1.xpose.msra.mxu0 0.0
  %135 = vmatprep.subr.mxu0 0.0
  %136 = vmatpush1.xpose.msra.mxu0 0.0
  %137 = vmatprep.subr.mxu0 0.0
  %138 = vmatpush1.xpose.msra.mxu0 0.0
  %139 = vmatprep.subr.mxu0 0.0
  %140 = vmatpush1.xpose.msra.mxu0 0.0
  %141 = vmatprep.subr.mxu0 0.0
  %142 = vmatpush1.xpose.msra.mxu0 0.0
  %143 = vmatprep.subr.mxu0 0.0
  %144 = vmatpush1.xpose.msra.mxu0 0.0
  %145 = vmatprep.subr.mxu0 0.0
  %146 = vmatpush1.xpose.msra.mxu0 0.0
  %147 = vmatprep.subr.mxu0 0.0
  %148 = vmatpush1.xpose.msra.mxu0 0.0
  %149 = vmatprep.subr.mxu0 0.0
  %150 = vmatpush1.xpose.msra.mxu0 0.0
  %151 = vmatprep.subr.mxu0 0.0
  %152 = vmatpush1.xpose.msra.mxu0 0.0
  %153 = vmatprep.mubr.f32.mxu0 0.0
  %154 = vmatmul.mubr.f32.gmra.mrb[0].mxu0 %v39
  %v155 = vpop.f32.mrb[0].mxu0
  %v156 = vadd.f32 %v35, %v155
  %v157 = vpop.f32.mrb[0].mxu0
  %158 = vdwg.mxu0
  %v159 = vmax.f32 %v156, 0.0
  %160 = vst [vmem:[%s3] sm:$0xff] %v159
  // Predicated region
  $region14: #{linear_plus_relu.1} parent=0 // pred_check
    _
  $region15: #{linear_plus_relu.1} parent=0 // pred_check_branch
    %162 = sbr.rel (0) target = $region17
  $region16: #{linear_plus_relu.1} parent=0 // pred_region
    _
  $region17: #{linear_plus_relu.1} parent=0 // pred_fallthru
    _
  // Predicated region
  $region18: #{linear_plus_relu.1} parent=0 // pred_check
    _
  $region19: #{linear_plus_relu.1} parent=0 // pred_check_branch
    %164 = sbr.rel (0) target = $region21
  $region20: #{linear_plus_relu.1} parent=0 // pred_region
    _
  $region21: #{linear_plus_relu.1} parent=0 // pred_fallthru
    _

</llo_original>
